<compile_context>
chip_gen: v7x
topology: tpu7x:2x2x1
jax: 0.10.0
libtpu: 0.0.40
codegen_flags: <defaults>
</compile_context>

<pallas_src>
import functools

import jax
import jax.numpy as jnp
from jax import lax
from jax.experimental import pallas as pl
from jax.experimental.pallas import tpu as pltpu


def _round_up(x, m):
    return (x + m - 1) // m * m


def _load_masked(x_ref, w1_ref, k_start, feat_dim, need_mask):
    """Load x / w1 blocks, zeroing feature lanes beyond the true feature dim."""
    x = x_ref[...]
    w1 = w1_ref[...]
    if need_mask:
        valid = feat_dim - k_start  # lanes of this block that hold real features
        lx = lax.broadcasted_iota(jnp.int32, x.shape, dimension=1)
        x = jnp.where(lx < valid, x, jnp.zeros_like(x))
        lw = lax.broadcasted_iota(jnp.int32, w1.shape, dimension=1)
        w1 = jnp.where(lw < valid, w1, jnp.zeros_like(w1))
    return x, w1


def _epilogue(h32, w2_ref, o_ref):
    # ReLU -> Linear(4,1) as broadcast-mul + lane reduce -> exact sigmoid via
    # tanh (overflow-free, EUP).  Runs once per batch tile; cost negligible.
    h = jnp.maximum(h32, 0.0)
    y = jnp.sum(h * w2_ref[...].astype(jnp.float32), axis=-1, keepdims=True)
    o_ref[...] = (0.5 * (jnp.tanh(0.5 * y) + 1.0)).astype(o_ref.dtype)


def _kernel_single_k(feat_dim, need_mask, x_ref, w1_ref, w2_ref, o_ref):
    # Whole feature dim fits one block: no scratch accumulator, no branches.
    x, w1 = _load_masked(x_ref, w1_ref, 0, feat_dim, need_mask)
    h = lax.dot_general(x, w1, (((1,), (1,)), ((), ())),
                        preferred_element_type=jnp.float32)
    _epilogue(h, w2_ref, o_ref)


def _kernel_multi_k(feat_dim, tk, need_mask,
                    x_ref, w1_ref, w2_ref, o_ref, acc_ref):
    k = pl.program_id(1)
    x, w1 = _load_masked(x_ref, w1_ref, k * tk, feat_dim, need_mask)
    part = lax.dot_general(x, w1, (((1,), (1,)), ((), ())),
                           preferred_element_type=jnp.float32)

    @pl.when(k == 0)
    def _():
        acc_ref[...] = part          # direct assign: no zero-init pass

    @pl.when(k != 0)
    def _():
        acc_ref[...] += part

    @pl.when(k == pl.num_programs(1) - 1)
    def _():
        _epilogue(acc_ref[...], w2_ref, o_ref)


@jax.jit
def light_confidence_net(x, w1, w2):
    """x: (B, ...) -> (B, 1).  w1: (4, F), w2: (1, 4) as in the PyTorch module."""
    B = x.shape[0]
    xf = x.reshape(B, -1)                       # == torch flatten(start_dim=1)
    F = xf.shape[1]
    itemsize = int(jnp.dtype(xf.dtype).itemsize)

    # ---- feature (reduction) tiling: balanced tk, capped width ----------------
    # HBM roofline saturates well below very wide blocks; balanced tk avoids
    # streaming padded lanes and keeps VMEM cheap (matters under v7x's 64 MiB).
    TK_MAX = 4096
    nk = pl.cdiv(F, TK_MAX)
    tk = min(_round_up(pl.cdiv(F, nk), 128), _round_up(F, 128))
    grid_k = pl.cdiv(F, tk)
    need_mask = (F % tk) != 0                    # feature remainder in last block

    # ---- batch tiling: target ~4 MiB of x per grid step ----------------------
    TARGET_BLOCK_BYTES = 4 * 1024 * 1024
    bt = (TARGET_BLOCK_BYTES // (tk * itemsize)) // 8 * 8
    bt = int(max(8, min(bt, 4096)))
    bt = min(bt, _round_up(B, 8))
    # v7x has 2 TensorCores; keep >=2 tiles on the "parallel" batch axis when
    # the batch is big enough to split (harmless on 1-TC v5e/v6e).
    if B > 8 and pl.cdiv(B, bt) < 2:
        bt = max(8, _round_up(pl.cdiv(B, 2), 8))
    grid_b = pl.cdiv(B, bt)

    # ---- generation-aware VMEM limit (actual usage is ~2 x block + tiny) ------
    try:
        vmem_cap = pltpu.get_tpu_info().vmem_capacity_bytes   # 128 MiB v5e/v6e, 64 MiB v7x
    except Exception:
        vmem_cap = 64 * 1024 * 1024                           # conservative fallback
    vmem_limit = int(min(vmem_cap * 3 // 4, 48 * 1024 * 1024))

    cost = pl.CostEstimate(
        flops=int(2 * B * F * 4 + 2 * B * 4),
        transcendentals=int(B),
        bytes_accessed=int(B * F * itemsize + 4 * F * itemsize + B * itemsize),
    )

    if grid_k == 1:
        kernel = functools.partial(_kernel_single_k, F, need_mask)
        return pl.pallas_call(
            kernel,
            out_shape=jax.ShapeDtypeStruct((B, 1), xf.dtype),
            grid_spec=pltpu.PrefetchScalarGridSpec(
                num_scalar_prefetch=0,
                grid=(grid_b,),
                in_specs=[
                    pl.BlockSpec((bt, tk), lambda b: (b, 0)),   # x chunk (streams)
                    pl.BlockSpec((4, tk), lambda b: (0, 0)),    # W1 lane-dense, resident
                    pl.BlockSpec((1, 4), lambda b: (0, 0)),     # W2 (resident)
                ],
                out_specs=pl.BlockSpec((bt, 1), lambda b: (b, 0)),
            ),
            compiler_params=pltpu.CompilerParams(
                dimension_semantics=("parallel",),
                vmem_limit_bytes=vmem_limit,
            ),
            cost_estimate=cost,
        )(xf, w1, w2)

    kernel = functools.partial(_kernel_multi_k, F, tk, need_mask)
    return pl.pallas_call(
        kernel,
        out_shape=jax.ShapeDtypeStruct((B, 1), xf.dtype),
        grid_spec=pltpu.PrefetchScalarGridSpec(
            num_scalar_prefetch=0,
            grid=(grid_b, grid_k),
            in_specs=[
                pl.BlockSpec((bt, tk), lambda b, k: (b, k)),    # x chunk (streams)
                pl.BlockSpec((4, tk), lambda b, k: (0, k)),     # W1 chunk, lane-dense
                pl.BlockSpec((1, 4), lambda b, k: (0, 0)),      # W2 (resident)
            ],
            out_specs=pl.BlockSpec((bt, 1), lambda b, k: (b, 0)),
            scratch_shapes=[pltpu.VMEM((bt, 4), jnp.float32)],
        ),
        compiler_params=pltpu.CompilerParams(
            dimension_semantics=("parallel", "arbitrary"),      # batch parallel, K reduction
            vmem_limit_bytes=vmem_limit,
        ),
        cost_estimate=cost,
    )(xf, w1, w2)


def _reference(x, w1, w2):
    xf = x.reshape(x.shape[0], -1)
    h = jnp.maximum(xf @ w1.T, 0.0)
    return jax.nn.sigmoid(h @ w2.T)


def _make_weights(key, F):
    k1, k2 = jax.random.split(key)
    bound1 = 1.0 / jnp.sqrt(F)
    bound2 = 1.0 / jnp.sqrt(4.0)
    w1 = jax.random.uniform(k1, (4, F), jnp.float32, -bound1, bound1)  # Linear(F, 4)
    w2 = jax.random.uniform(k2, (1, 4), jnp.float32, -bound2, bound2)  # Linear(4, 1)
    return w1, w2


if __name__ == "__main__":
    key = jax.random.PRNGKey(0)

    # Case 1: small shape consistent with the module: x (B=2, 8, 32) -> F = 256.
    kx, kw = jax.random.split(key)
    x = jax.random.normal(kx, (2, 8, 32), dtype=jnp.float32)
    w1, w2 = _make_weights(kw, 8 * 32)
    out = jax.block_until_ready(light_confidence_net(x, w1, w2))
    ref = _reference(x, w1, w2)
    assert out.shape == (2, 1), out.shape
    assert jnp.allclose(out, ref, atol=1e-5, rtol=1e-4), (out, ref)

    # Case 2: non-dividing batch + feature remainder (exercises in-kernel masking).
    kx2, kw2 = jax.random.split(jax.random.PRNGKey(1))
    x2 = jax.random.normal(kx2, (5, 10, 30), dtype=jnp.float32)   # F = 300
    w1b, w2b = _make_weights(kw2, 300)
    out2 = jax.block_until_ready(light_confidence_net(x2, w1b, w2b))
    assert out2.shape == (5, 1)
    assert jnp.allclose(out2, _reference(x2, w1b, w2b), atol=1e-5, rtol=1e-4)

    # Case 3: multi-K-block reduction path with a feature remainder.
    kx3, kw3 = jax.random.split(jax.random.PRNGKey(2))
    x3 = jax.random.normal(kx3, (3, 45, 100), dtype=jnp.float32)  # F = 4500 > TK_MAX
    w1c, w2c = _make_weights(kw3, 4500)
    out3 = jax.block_until_ready(light_confidence_net(x3, w1c, w2c))
    assert out3.shape == (3, 1)
    assert jnp.allclose(out3, _reference(x3, w1c, w2c), atol=1e-5, rtol=1e-4)

    print("KERNEL_OK")
</pallas_src>

<mosaic_0001>
module attributes {stable_mosaic.version = 11 : i64} {
  func.func @_kernel_single_k(%arg0: i32, %arg1: memref<8x256xf32, #tpu.memory_space<vmem>>, %arg2: memref<4x256xf32, #tpu.memory_space<vmem>>, %arg3: memref<1x4xf32, #tpu.memory_space<vmem>>, %arg4: memref<8x1xf32, #tpu.memory_space<vmem>>) attributes {dimension_semantics = [#tpu.dimension_semantics<parallel>], iteration_bounds = array<i64: 1>, scalar_prefetch = 0 : i64, scratch_operands = 0 : i64, tpu.core_type = #tpu.core_type<tc>, window_params = [{transform_indices = @transform_0, window_bounds = array<i64: 8, 256>}, {pipeline_mode = #tpu.pipeline_mode<synchronous>, transform_indices = @transform_1, window_bounds = array<i64: 4, 256>}, {pipeline_mode = #tpu.pipeline_mode<synchronous>, transform_indices = @transform_2, window_bounds = array<i64: 1, 4>}, {transform_indices = @transform_3, window_bounds = array<i64: 8, 1>}]} {
    %c0 = arith.constant 0 : index
    %c0_0 = arith.constant 0 : index
    %0 = vector.load %arg1[%c0, %c0_0] : memref<8x256xf32, #tpu.memory_space<vmem>>, vector<8x256xf32>
    %c0_1 = arith.constant 0 : index
    %c0_2 = arith.constant 0 : index
    %1 = vector.load %arg2[%c0_1, %c0_2] : memref<4x256xf32, #tpu.memory_space<vmem>>, vector<4x256xf32>
    %cst = arith.constant dense<0.000000e+00> : vector<8x4xf32>
    %2 = tpu.matmul %0, %1, %cst {dimension_numbers = #tpu.dot_dimension_numbers<[1], [1], [0], [0], [0, 0, 1, 0], [], []>} : vector<8x256xf32>, vector<4x256xf32>, vector<8x4xf32> -> vector<8x4xf32>
    %cst_3 = arith.constant 0.000000e+00 : f32
    %3 = vector.broadcast %cst_3 : f32 to vector<8x4xf32>
    %4 = arith.maximumf %2, %3 : vector<8x4xf32>
    %c0_4 = arith.constant 0 : index
    %c0_5 = arith.constant 0 : index
    %5 = vector.load %arg3[%c0_4, %c0_5] : memref<1x4xf32, #tpu.memory_space<vmem>>, vector<1x4xf32>
    %6 = vector.broadcast %5 : vector<1x4xf32> to vector<8x4xf32>
    %7 = arith.mulf %4, %6 : vector<8x4xf32>
    %cst_6 = arith.constant dense<0.000000e+00> : vector<8xf32>
    %8 = vector.multi_reduction <add>, %7, %cst_6 [1] : vector<8x4xf32> to vector<8xf32>
    %9 = vector.shape_cast %8 : vector<8xf32> to vector<8x1xf32>
    %cst_7 = arith.constant 5.000000e-01 : f32
    %10 = vector.broadcast %cst_7 : f32 to vector<8x1xf32>
    %11 = arith.mulf %10, %9 : vector<8x1xf32>
    %12 = math.tanh %11 : vector<8x1xf32>
    %cst_8 = arith.constant 1.000000e+00 : f32
    %13 = vector.broadcast %cst_8 : f32 to vector<8x1xf32>
    %14 = arith.addf %12, %13 : vector<8x1xf32>
    %cst_9 = arith.constant 5.000000e-01 : f32
    %15 = vector.broadcast %cst_9 : f32 to vector<8x1xf32>
    %16 = arith.mulf %15, %14 : vector<8x1xf32>
    %c0_10 = arith.constant 0 : index
    %c0_11 = arith.constant 0 : index
    %17 = vector.load %arg4[%c0_10, %c0_11] : memref<8x1xf32, #tpu.memory_space<vmem>>, vector<8x1xf32>
    tpu.vector_store %arg4[%c0_10, %c0_11], %16 {strides = array<i32>} : memref<8x1xf32, #tpu.memory_space<vmem>>, vector<8x1xf32>,
    return
  }
  func.func @transform_0(%arg0: i32) -> (i32, i32) {
    %c0_i32 = arith.constant 0 : i32
    %c0_i32_0 = arith.constant 0 : i32
    return %arg0, %c0_i32 : i32, i32
  }
  func.func @transform_1(%arg0: i32) -> (i32, i32) {
    %c0_i32 = arith.constant 0 : i32
    %c0_i32_0 = arith.constant 0 : i32
    %c0_i32_1 = arith.constant 0 : i32
    return %c0_i32, %c0_i32_0 : i32, i32
  }
  func.func @transform_2(%arg0: i32) -> (i32, i32) {
    %c0_i32 = arith.constant 0 : i32
    %c0_i32_0 = arith.constant 0 : i32
    %c0_i32_1 = arith.constant 0 : i32
    return %c0_i32, %c0_i32_0 : i32, i32
  }
  func.func @transform_3(%arg0: i32) -> (i32, i32) {
    %c0_i32 = arith.constant 0 : i32
    %c0_i32_0 = arith.constant 0 : i32
    return %arg0, %c0_i32 : i32, i32
  }
}

</mosaic_0001>

<llo_original>
// kernel: light_confidence_net.1
$region0: #{light_confidence_net.1}
  #allocation0 [shape = 'u32[]', space=smem, size = 0x4, offset = 0x4, fixed_abs, tag = 'smem constant byte address 0x4 - core index']
  #allocation1 [shape = 'u32[144,128]{1,0:T(1,128)}', space=vmem, size = 0x12000, scoped, tag = 'internal scratch']
  %s0 = inlined_call_operand.vmem [shape: f32[2,256], index: 0, kind: input, shape index: {}]
  %s1 = inlined_call_operand.vmem [shape: f32[4,256], index: 1, kind: input, shape index: {}]
  %s2 = inlined_call_operand.vmem [shape: f32[1,4], index: 2, kind: input, shape index: {}]
  %s3 = inlined_call_operand.vmem [shape: f32[2,1], index: 3, kind: output, shape index: {}]
  %s4 = sld [smem:[#allocation0]]
  $region52: #{light_confidence_net.1} parent=0
    _
  %s6 = ssub.s32 1, %s4
  %s7 = scalar_select 0, %s6, %s4
  $region1: #{light_confidence_net.1} parent=0
    #allocation2 [shape = 'u8[4096]{0}', space=vmem, size = 0x1000, scoped, tag = 'output window, operand 0, single buffered']
    // Predicated region
    $region2: #{light_confidence_net.1} parent=1 // pred_check
      _
    $region3: #{light_confidence_net.1} parent=1 // pred_check_branch
      %9 = sbr.rel (0) target = $region5
    $region4: #{light_confidence_net.1} parent=1 // pred_region
      _
    $region5: #{light_confidence_net.1} parent=1 // pred_fallthru
      _
    // Predicated region
    $region6: #{light_confidence_net.1} parent=1 // pred_check
      _
    $region7: #{light_confidence_net.1} parent=1 // pred_check_branch
      %11 = sbr.rel (0) target = $region9
    $region8: #{light_confidence_net.1} parent=1 // pred_region
      _
    $region9: #{light_confidence_net.1} parent=1 // pred_fallthru
      _
    // Predicated region
    $region10: #{light_confidence_net.1} parent=1 // pred_check
      _
    $region11: #{light_confidence_net.1} parent=1 // pred_check_branch
      %13 = sbr.rel (0) target = $region13
    $region12: #{light_confidence_net.1} parent=1 // pred_region
      _
    $region13: #{light_confidence_net.1} parent=1 // pred_fallthru
      _
    %v14 = vld [vmem:[%s0] sm:$0xf]
    %v15 = vld [vmem:[%s0 + $0x4] sm:$0xf]
    %v16 = vld [vmem:[%s0 + $0x8] sm:$0xf]
    %v17 = vld [vmem:[%s0 + $0xc] sm:$0xf]
    %v18 = vld [vmem:[%s1] sm:$0xff]
    %v23 = vcombine.low %v14, %v15
    %v24 = vcombine.low %v16, %v17
    %v26 = vunpack.c.l.s4 1983009808
    %v27 = vunpack.c.0.s8 %v26
    %v28 = vlaneseq
    %v29 = vshrl.u32 %v28, 7
    %v30 = vsub.s32 %v27, %v29
    %v31 = vrot.slane %v23, %v30
    %v33 = vunpack.c.l.s4 1983009808
    %v34 = vunpack.c.0.s8 %v33
    %v35 = vlaneseq
    %v36 = vshrl.u32 %v35, 7
    %v37 = vsub.s32 %v34, %v36
    %v38 = vrot.slane %v24, %v37
    %v39 = vcombine.low %v31, %v38
    %v40 = vcombine.high %v31, %v38
    %v44 = vcombine.high %v18, %v18
    %46 = vmatprep.subr.mxu0 %v44
    %47 = vmatpush1.xpose.msra.mxu0 %v18
    %48 = vmatprep.subr.mxu0 0.0
    %49 = vmatpush1.xpose.msra.mxu0 0.0
    %50 = vmatprep.subr.mxu0 0.0
    %51 = vmatpush1.xpose.msra.mxu0 0.0
    %52 = vmatprep.subr.mxu0 0.0
    %53 = vmatpush1.xpose.msra.mxu0 0.0
    %54 = vmatprep.subr.mxu0 0.0
    %55 = vmatpush1.xpose.msra.mxu0 0.0
    %56 = vmatprep.subr.mxu0 0.0
    %57 = vmatpush1.xpose.msra.mxu0 0.0
    %58 = vmatprep.subr.mxu0 0.0
    %59 = vmatpush1.xpose.msra.mxu0 0.0
    %60 = vmatprep.subr.mxu0 0.0
    %61 = vmatpush1.xpose.msra.mxu0 0.0
    %62 = vmatprep.subr.mxu0 0.0
    %63 = vmatpush1.xpose.msra.mxu0 0.0
    %64 = vmatprep.subr.mxu0 0.0
    %65 = vmatpush1.xpose.msra.mxu0 0.0
    %66 = vmatprep.subr.mxu0 0.0
    %67 = vmatpush1.xpose.msra.mxu0 0.0
    %68 = vmatprep.subr.mxu0 0.0
    %69 = vmatpush1.xpose.msra.mxu0 0.0
    %70 = vmatprep.subr.mxu0 0.0
    %71 = vmatpush1.xpose.msra.mxu0 0.0
    %72 = vmatprep.subr.mxu0 0.0
    %73 = vmatpush1.xpose.msra.mxu0 0.0
    %74 = vmatprep.subr.mxu0 0.0
    %75 = vmatpush1.xpose.msra.mxu0 0.0
    %76 = vmatprep.subr.mxu0 0.0
    %77 = vmatpush1.xpose.msra.mxu0 0.0
    %78 = vmatprep.subr.mxu0 0.0
    %79 = vmatpush1.xpose.msra.mxu0 0.0
    %80 = vmatprep.subr.mxu0 0.0
    %81 = vmatpush1.xpose.msra.mxu0 0.0
    %82 = vmatprep.subr.mxu0 0.0
    %83 = vmatpush1.xpose.msra.mxu0 0.0
    %84 = vmatprep.subr.mxu0 0.0
    %85 = vmatpush1.xpose.msra.mxu0 0.0
    %86 = vmatprep.subr.mxu0 0.0
    %87 = vmatpush1.xpose.msra.mxu0 0.0
    %88 = vmatprep.subr.mxu0 0.0
    %89 = vmatpush1.xpose.msra.mxu0 0.0
    %90 = vmatprep.subr.mxu0 0.0
    %91 = vmatpush1.xpose.msra.mxu0 0.0
    %92 = vmatprep.subr.mxu0 0.0
    %93 = vmatpush1.xpose.msra.mxu0 0.0
    %94 = vmatprep.subr.mxu0 0.0
    %95 = vmatpush1.xpose.msra.mxu0 0.0
    %96 = vmatprep.subr.mxu0 0.0
    %97 = vmatpush1.xpose.msra.mxu0 0.0
    %98 = vmatprep.subr.mxu0 0.0
    %99 = vmatpush1.xpose.msra.mxu0 0.0
    %100 = vmatprep.subr.mxu0 0.0
    %101 = vmatpush1.xpose.msra.mxu0 0.0
    %102 = vmatprep.subr.mxu0 0.0
    %103 = vmatpush1.xpose.msra.mxu0 0.0
    %104 = vmatprep.subr.mxu0 0.0
    %105 = vmatpush1.xpose.msra.mxu0 0.0
    %106 = vmatprep.subr.mxu0 0.0
    %107 = vmatpush1.xpose.msra.mxu0 0.0
    %108 = vmatprep.subr.mxu0 0.0
    %109 = vmatpush1.xpose.msra.mxu0 0.0
    %110 = vmatprep.mubr.f32.mxu0 %v40
    %111 = vmatmul.mubr.f32.gmra.mrb[0].mxu0 %v39
    %v112 = vpop.f32.mrb[0].mxu0
    %v113 = vadd.f32 0.0, %v112
    %v114 = vpop.f32.mrb[0].mxu0
    %115 = vdwg.mxu0
    %v116 = vmax.f32 %v113, 0.0
    %v117 = vld [vmem:[%s2] sm:$0x1]
    %v119 = vlaneseq
    %v120 = vshrl.u32 %v119, 7
    %v121 = vsub.s32 0, %v120
    %v122 = vrot.slane %v117, %v121
    %v124 = vmul.f32 %v116, %v122
    %vm125 = vcmask 31744
    %v126 = vsel %vm125, %v124, 0.0
    %127 = vadd.xlane.f32.xlu0 %v126
    %v128 = vpop.xlane.xlu0 %127
    %v129 = vmul.f32 %v128, 0.5
    %v130 = vtanh.pop %v129
    %v131 = vadd.f32 %v130, 1.0
    %v132 = vmul.f32 %v131, 0.5
    %vm133 = vcmask 7168
    %134 = vst.msk [vmem:[#allocation2] sm:$0xff] %vm133, %v132
    // Predicated region
    $region14: #{light_confidence_net.1} parent=1 // pred_check
      _
    $region15: #{light_confidence_net.1} parent=1 // pred_check_branch
      %136 = sbr.rel (0) target = $region17
    $region16: #{light_confidence_net.1} parent=1 // pred_region
      // Predicated region
      $region18: #{light_confidence_net.1} parent=16 // pred_check
        _
      $region19: #{light_confidence_net.1} parent=16 // pred_check_branch
        %138 = sbr.rel (0) target = $region21
      $region20: #{light_confidence_net.1} parent=16 // pred_region
        // Predicated region
        $region22: #{light_confidence_net.1} parent=20 // pred_check
          _
        $region23: #{light_confidence_net.1} parent=20 // pred_check_branch
          %140 = sbr.rel target = $region25
        $region24: #{light_confidence_net.1} parent=20 // pred_region
          // Predicated region
          $region37: #{light_confidence_net.1} parent=24 // pred_check
            _
          $region38: #{light_confidence_net.1} parent=24 // pred_check_branch
            %155 = sbr.rel (0) target = $region40
          $region39: #{light_confidence_net.1} parent=24 // pred_region
            loop: start=0, step=1, limit=1
            $region41: #{light_confidence_net.1} parent=39 // loop_pre_header
              _
            $region42: #{light_confidence_net.1} parent=39 // loop_header
              %s158 = sphi 0, %s162
              %p159 = scmp.ge.s32.totalorder %s158, 1
              %s163 = sphi [#allocation2], [#allocation2]
              %s164 = sphi %s3, %s3
            $region43: #{light_confidence_net.1} parent=39 // loop_header_branch
              %161 = sbr.rel (%p159) target = $region47
            $region44: #{light_confidence_net.1} parent=39 // loop_body
              %v165 = vld [vmem:[%s163] sm:$0x3]
              %166 = vst [vmem:[%s164] sm:$0x3] %v165
            $region45: #{light_confidence_net.1} parent=39 // loop_footer
              %s162 = sadd.s32 1, %s158
            $region46: #{light_confidence_net.1} parent=39 // loop_footer_branch
              %157 = sbr.rel target = $region42
            $region47: #{light_confidence_net.1} parent=39 // loop_exit
              _
          $region40: #{light_confidence_net.1} parent=24 // pred_fallthru
            _
        $region25: #{light_confidence_net.1} parent=20 // pred_fallthru
          _
        // Predicated region
        $region26: #{light_confidence_net.1} parent=20 // pred_check
          _
        $region27: #{light_confidence_net.1} parent=20 // pred_check_branch
          %142 = sbr.rel (0) target = $region29
        $region28: #{light_confidence_net.1} parent=20 // pred_region
          loop: start=0, step=1, limit=1
          $region30: #{light_confidence_net.1} parent=28 // loop_pre_header
            _
          $region31: #{light_confidence_net.1} parent=28 // loop_header
            %s145 = sphi 0, %s149
            %p146 = scmp.ge.s32.totalorder %s145, 1
            %s150 = sphi [#allocation2], [#allocation2]
            %s151 = sphi %s3, %s3
          $region32: #{light_confidence_net.1} parent=28 // loop_header_branch
            %148 = sbr.rel (%p146) target = $region36
          $region33: #{light_confidence_net.1} parent=28 // loop_body
            %v152 = vld [vmem:[%s150] sm:$0x3]
            %153 = vst [vmem:[%s151] sm:$0x3] %v152
          $region34: #{light_confidence_net.1} parent=28 // loop_footer
            %s149 = sadd.s32 1, %s145
          $region35: #{light_confidence_net.1} parent=28 // loop_footer_branch
            %144 = sbr.rel target = $region31
          $region36: #{light_confidence_net.1} parent=28 // loop_exit
            _
        $region29: #{light_confidence_net.1} parent=20 // pred_fallthru
          _
      $region21: #{light_confidence_net.1} parent=16 // pred_fallthru
        _
      %167 = vnop
    $region17: #{light_confidence_net.1} parent=1 // pred_fallthru
      _
    // Predicated region
    $region48: #{light_confidence_net.1} parent=1 // pred_check
      _
    $region49: #{light_confidence_net.1} parent=1 // pred_check_branch
      %169 = sbr.rel (0) target = $region51
    $region50: #{light_confidence_net.1} parent=1 // pred_region
      _
    $region51: #{light_confidence_net.1} parent=1 // pred_fallthru
      _

</llo_original>
